<compile_context>
chip_gen: v7x
topology: tpu7x:2x2x1
jax: 0.10.0
libtpu: 0.0.40
codegen_flags: <defaults>
</compile_context>

<pallas_src>
import numpy as np
import jax
import jax.numpy as jnp
from jax.experimental import pallas as pl
from jax.experimental.pallas import tpu as pltpu


# ----------------------------------------------------------------------------
# Fused Pallas kernel: shared ReLU-MLP + all heads in one pass
# ----------------------------------------------------------------------------
def make_fused_qnet_kernel(n_shared_layers):
    """Kernel computing:

        h   = ReLU(... ReLU(x @ W0 + b0) ... @ W_{n-1} + b_{n-1})   # shared MLP
        out = h @ W_heads + b_heads                                  # all heads fused

    Ref order: x, (W0, b0), ..., (W_{n-1}, b_{n-1}), W_heads, b_heads, out.
    W_heads is (H, A*C), b_heads is (1, A*C), out is (B, A*C).
    """
    def kernel(*refs):
        x_ref = refs[0]
        o_ref = refs[-1]

        h = x_ref[...]
        for i in range(n_shared_layers):
            w = refs[1 + 2 * i][...]          # (F_in, F_out)
            b = refs[2 + 2 * i][...]          # (1, F_out)
            h = jnp.dot(h, w, preferred_element_type=jnp.float32) + b
            h = jnp.maximum(h, 0.0)           # ReLU on every shared layer

        w_heads = refs[1 + 2 * n_shared_layers][...]   # (H, A*C)
        b_heads = refs[2 + 2 * n_shared_layers][...]   # (1, A*C)
        o_ref[...] = (
            jnp.dot(h, w_heads, preferred_element_type=jnp.float32) + b_heads
        )
    return kernel


# ----------------------------------------------------------------------------
# Wrapper
# ----------------------------------------------------------------------------
def multihead_qnet_forward(obs, params, input_ids, dim_action_choices):
    """Runs the MultiHeadQNetFC forward pass.

    obs:       (B, dim_state + dim_goal) float32
    params:    dict with 'shared' = [(W, b), ...] and
                         'heads'  = (W_fused (H, A*C), b_fused (1, A*C))
    input_ids: np.ndarray of column indices (state dims + selected goal dims)
    Returns a list of A arrays, each (B, dim_action_choices).
    """
    shared_params = params["shared"]
    w_heads, b_heads = params["heads"]          # (H, A*C), (1, A*C)

    # UVFA input column selection (plain-JAX glue).
    x = jnp.take(obs, jnp.asarray(input_ids, dtype=jnp.int32), axis=1)

    B = x.shape[0]
    n_layers = len(shared_params)
    AC = w_heads.shape[1]
    C = dim_action_choices
    A = AC // C

    flat = [x]
    for (w, b) in shared_params:
        flat += [w, b]
    flat += [w_heads, b_heads]

    n_refs = len(flat)

    # Single pallas_call: whole problem fits in VMEM, no grid, one launch.
    out = pl.pallas_call(
        make_fused_qnet_kernel(n_layers),
        out_shape=jax.ShapeDtypeStruct((B, AC), jnp.float32),
        in_specs=[pl.BlockSpec(memory_space=pltpu.MemorySpace.VMEM)] * n_refs,
        out_specs=pl.BlockSpec(memory_space=pltpu.MemorySpace.VMEM),
    )(*flat)

    # Module returns a python list of per-head tensors (B, C); slice the slab.
    return [out[:, i * C:(i + 1) * C] for i in range(A)]


# ----------------------------------------------------------------------------
# Deterministic parameter construction (PyTorch nn.Linear-style uniform init).
# Head weights are packed ONCE here into the fused (H, A*C) layout.
# ----------------------------------------------------------------------------
def init_params(key, dim_in, layers, dim_actions, dim_action_choices):
    def linear(k, fan_in, fan_out):
        kw, kb = jax.random.split(k)
        bound = 1.0 / float(np.sqrt(fan_in))
        w = jax.random.uniform(kw, (fan_in, fan_out), jnp.float32, -bound, bound)
        b = jax.random.uniform(kb, (1, fan_out), jnp.float32, -bound, bound)
        return w, b

    shared_sizes = (dim_in,) + tuple(layers)
    shared = []
    for j in range(len(shared_sizes) - 1):
        key, sub = jax.random.split(key)
        shared.append(linear(sub, shared_sizes[j], shared_sizes[j + 1]))

    H = layers[-1]
    ws, bs = [], []
    for _ in range(dim_actions):
        key, sub = jax.random.split(key)
        w, b = linear(sub, H, dim_action_choices)   # (H, C), (1, C)
        ws.append(w)
        bs.append(b)
    # Pack all heads into one matmul: (H, A*C) and (1, A*C).
    w_heads = jnp.concatenate(ws, axis=1)           # (H, A*C)
    b_heads = jnp.concatenate(bs, axis=1)           # (1, A*C)
    return {"shared": shared, "heads": (w_heads, b_heads)}


# ----------------------------------------------------------------------------
# Pure-JAX reference for correctness checking
# ----------------------------------------------------------------------------
def reference_forward(obs, params, input_ids, dim_action_choices):
    x = jnp.take(obs, jnp.asarray(input_ids, dtype=jnp.int32), axis=1)
    for (w, b) in params["shared"]:
        x = jnp.maximum(x @ w + b, 0.0)
    w_heads, b_heads = params["heads"]
    out = x @ w_heads + b_heads
    C = dim_action_choices
    A = w_heads.shape[1] // C
    return [out[:, i * C:(i + 1) * C] for i in range(A)]


if __name__ == "__main__":
    # Small shapes consistent with the module.
    dim_state = 8
    dim_goal = 4
    goal_ids = (0, 2)
    dim_actions = 3
    dim_action_choices = 5
    layers = (32, 32)
    batch = 2

    goal_ids_np = np.array(goal_ids)
    input_ids = np.concatenate([np.arange(dim_state), goal_ids_np + dim_state])
    dim_in = dim_state + len(goal_ids)

    key = jax.random.PRNGKey(0)
    key, pk, ok = jax.random.split(key, 3)
    params = init_params(pk, dim_in, layers, dim_actions, dim_action_choices)
    obs = jax.random.normal(ok, (batch, dim_state + dim_goal), dtype=jnp.float32)

    outs = multihead_qnet_forward(obs, params, input_ids, dim_action_choices)
    outs = [jax.block_until_ready(o) for o in outs]

    refs = reference_forward(obs, params, input_ids, dim_action_choices)
    ok_all = all(
        o.shape == (batch, dim_action_choices)
        and bool(jnp.allclose(o, r, atol=1e-5, rtol=1e-5))
        for o, r in zip(outs, refs)
    )
    assert ok_all, "Pallas output mismatch vs. reference"
    print("KERNEL_OK")
</pallas_src>

<mosaic_0001>
module attributes {stable_mosaic.version = 11 : i64} {
  func.func @kernel(%arg0: memref<2x10xf32, #tpu.memory_space<vmem>>, %arg1: memref<10x32xf32, #tpu.memory_space<vmem>>, %arg2: memref<1x32xf32, #tpu.memory_space<vmem>>, %arg3: memref<32x32xf32, #tpu.memory_space<vmem>>, %arg4: memref<1x32xf32, #tpu.memory_space<vmem>>, %arg5: memref<32x15xf32, #tpu.memory_space<vmem>>, %arg6: memref<1x15xf32, #tpu.memory_space<vmem>>, %arg7: memref<2x15xf32, #tpu.memory_space<vmem>>) attributes {dimension_semantics = [], scalar_prefetch = 0 : i64, scratch_operands = 0 : i64, tpu.core_type = #tpu.core_type<tc>} {
    %c0 = arith.constant 0 : index
    %c0_0 = arith.constant 0 : index
    %0 = vector.load %arg0[%c0, %c0_0] : memref<2x10xf32, #tpu.memory_space<vmem>>, vector<2x10xf32>
    %c0_1 = arith.constant 0 : index
    %c0_2 = arith.constant 0 : index
    %1 = vector.load %arg1[%c0_1, %c0_2] : memref<10x32xf32, #tpu.memory_space<vmem>>, vector<10x32xf32>
    %c0_3 = arith.constant 0 : index
    %c0_4 = arith.constant 0 : index
    %2 = vector.load %arg2[%c0_3, %c0_4] : memref<1x32xf32, #tpu.memory_space<vmem>>, vector<1x32xf32>
    %cst = arith.constant dense<0.000000e+00> : vector<2x32xf32>
    %3 = tpu.matmul %0, %1, %cst {dimension_numbers = #tpu.dot_dimension_numbers<[1], [0], [0], [1], [0, 0, 1, 1], [], []>} : vector<2x10xf32>, vector<10x32xf32>, vector<2x32xf32> -> vector<2x32xf32>
    %4 = vector.broadcast %2 : vector<1x32xf32> to vector<2x32xf32>
    %5 = arith.addf %3, %4 : vector<2x32xf32>
    %cst_5 = arith.constant 0.000000e+00 : f32
    %6 = vector.broadcast %cst_5 : f32 to vector<2x32xf32>
    %7 = arith.maximumf %5, %6 : vector<2x32xf32>
    %c0_6 = arith.constant 0 : index
    %c0_7 = arith.constant 0 : index
    %8 = vector.load %arg3[%c0_6, %c0_7] : memref<32x32xf32, #tpu.memory_space<vmem>>, vector<32x32xf32>
    %c0_8 = arith.constant 0 : index
    %c0_9 = arith.constant 0 : index
    %9 = vector.load %arg4[%c0_8, %c0_9] : memref<1x32xf32, #tpu.memory_space<vmem>>, vector<1x32xf32>
    %cst_10 = arith.constant dense<0.000000e+00> : vector<2x32xf32>
    %10 = tpu.matmul %7, %8, %cst_10 {dimension_numbers = #tpu.dot_dimension_numbers<[1], [0], [0], [1], [0, 0, 1, 1], [], []>} : vector<2x32xf32>, vector<32x32xf32>, vector<2x32xf32> -> vector<2x32xf32>
    %11 = vector.broadcast %9 : vector<1x32xf32> to vector<2x32xf32>
    %12 = arith.addf %10, %11 : vector<2x32xf32>
    %cst_11 = arith.constant 0.000000e+00 : f32
    %13 = vector.broadcast %cst_11 : f32 to vector<2x32xf32>
    %14 = arith.maximumf %12, %13 : vector<2x32xf32>
    %c0_12 = arith.constant 0 : index
    %c0_13 = arith.constant 0 : index
    %15 = vector.load %arg5[%c0_12, %c0_13] : memref<32x15xf32, #tpu.memory_space<vmem>>, vector<32x15xf32>
    %c0_14 = arith.constant 0 : index
    %c0_15 = arith.constant 0 : index
    %16 = vector.load %arg6[%c0_14, %c0_15] : memref<1x15xf32, #tpu.memory_space<vmem>>, vector<1x15xf32>
    %cst_16 = arith.constant dense<0.000000e+00> : vector<2x15xf32>
    %17 = tpu.matmul %14, %15, %cst_16 {dimension_numbers = #tpu.dot_dimension_numbers<[1], [0], [0], [1], [0, 0, 1, 1], [], []>} : vector<2x32xf32>, vector<32x15xf32>, vector<2x15xf32> -> vector<2x15xf32>
    %18 = vector.broadcast %16 : vector<1x15xf32> to vector<2x15xf32>
    %19 = arith.addf %17, %18 : vector<2x15xf32>
    %c0_17 = arith.constant 0 : index
    %c0_18 = arith.constant 0 : index
    %20 = vector.load %arg7[%c0_17, %c0_18] : memref<2x15xf32, #tpu.memory_space<vmem>>, vector<2x15xf32>
    tpu.vector_store %arg7[%c0_17, %c0_18], %19 {strides = array<i32>} : memref<2x15xf32, #tpu.memory_space<vmem>>, vector<2x15xf32>,
    return
  }
}

</mosaic_0001>

<llo_original>
// kernel: tpu_custom_call.1
$region0: #{tpu_custom_call.1}
  #allocation0 [shape = 'u32[]', space=smem, size = 0x4, offset = 0x4, fixed_abs, tag = 'smem constant byte address 0x4 - core index']
  #allocation1 [shape = 'u32[144,128]{1,0:T(1,128)}', space=vmem, size = 0x12000, scoped, tag = 'internal scratch']
  %s0 = inlined_call_operand.vmem [shape: f32[2,10], index: 0, kind: input, shape index: {}]
  %s1 = inlined_call_operand.vmem [shape: f32[10,32], index: 1, kind: input, shape index: {}]
  %s2 = inlined_call_operand.hbm [shape: f32[1,32], index: 2, kind: input, shape index: {}]
  %s3 = inlined_call_operand.vmem [shape: f32[32,32], index: 3, kind: input, shape index: {}]
  %s4 = inlined_call_operand.hbm [shape: f32[1,32], index: 4, kind: input, shape index: {}]
  %s5 = inlined_call_operand.vmem [shape: f32[32,15], index: 5, kind: input, shape index: {}]
  %s6 = inlined_call_operand.vmem [shape: f32[1,15], index: 6, kind: input, shape index: {}]
  %s7 = inlined_call_operand.hbm [shape: f32[2,15], index: 7, kind: output, shape index: {}]
  %s8 = sld [smem:[#allocation0]]
  $region46: #{tpu_custom_call.1} parent=0
    _
  %s10 = ssub.s32 1, %s8
  %s11 = scalar_select 0, %s10, %s8
  $region1: #{tpu_custom_call.1} parent=0
    #allocation2 [shape = 'u8[512]{0}', space=vmem, size = 0x400, scoped, tag = 'input window, operand 2, single buffered']
    #allocation3 [shape = 's32[1]{0}', space=sflag, size = 0x4, scoped, tag = 'scoped memory for tpu_custom_call.1']
    #allocation4 [shape = 's32[1]{0}', space=sflag, size = 0x4, scoped, tag = 'scoped memory for tpu_custom_call.1']
    #allocation5 [shape = 'u8[512]{0}', space=vmem, size = 0x400, scoped, tag = 'input window, operand 4, single buffered']
    #allocation6 [shape = 's32[1]{0}', space=sflag, size = 0x4, scoped, tag = 'scoped memory for tpu_custom_call.1']
    #allocation7 [shape = 'u8[1024]{0}', space=vmem, size = 0x400, scoped, tag = 'output window, operand 0, single buffered']
    %12 = vsyncpa [#allocation3], 0
    %13 = vsyncpa [#allocation6], 0
    %14 = vsyncpa [#allocation4], 0
    // Predicated region
    $region2: #{tpu_custom_call.1} parent=1 // pred_check
      _
    $region3: #{tpu_custom_call.1} parent=1 // pred_check_branch
      %16 = sbr.rel (0) target = $region5
    $region4: #{tpu_custom_call.1} parent=1 // pred_region
      _
    $region5: #{tpu_custom_call.1} parent=1 // pred_fallthru
      _
    // Predicated region
    $region6: #{tpu_custom_call.1} parent=1 // pred_check
      _
    $region7: #{tpu_custom_call.1} parent=1 // pred_check_branch
      %18 = sbr.rel (0) target = $region9
    $region8: #{tpu_custom_call.1} parent=1 // pred_region
      _
    $region9: #{tpu_custom_call.1} parent=1 // pred_fallthru
      _
    // Predicated region
    $region10: #{tpu_custom_call.1} parent=1 // pred_check
      _
    $region11: #{tpu_custom_call.1} parent=1 // pred_check_branch
      %20 = sbr.rel (0) target = $region13
    $region12: #{tpu_custom_call.1} parent=1 // pred_region
      %s22 = ssub.s32 16, 16
      %23 = vsyncadd [#allocation3], %s22
      %s25 = sshll.u32 [#allocation2], 4
      %s26 = int_to_ptr.vmem [resolvable:$true] %s25
      %28 = dma.hbm_to_vmem [thread:$0]  %s2, 16, %s26, [#allocation3]
    $region13: #{tpu_custom_call.1} parent=1 // pred_fallthru
      _
    // Predicated region
    $region14: #{tpu_custom_call.1} parent=1 // pred_check
      _
    $region15: #{tpu_custom_call.1} parent=1 // pred_check_branch
      %30 = sbr.rel (0) target = $region17
    $region16: #{tpu_custom_call.1} parent=1 // pred_region
      _
    $region17: #{tpu_custom_call.1} parent=1 // pred_fallthru
      _
    // Predicated region
    $region18: #{tpu_custom_call.1} parent=1 // pred_check
      _
    $region19: #{tpu_custom_call.1} parent=1 // pred_check_branch
      %32 = sbr.rel (0) target = $region21
    $region20: #{tpu_custom_call.1} parent=1 // pred_region
      %s34 = ssub.s32 16, 16
      %35 = vsyncadd [#allocation6], %s34
      %s37 = sshll.u32 [#allocation5], 4
      %s38 = int_to_ptr.vmem [resolvable:$true] %s37
      %40 = dma.hbm_to_vmem [thread:$0]  %s4, 16, %s38, [#allocation6]
    $region21: #{tpu_custom_call.1} parent=1 // pred_fallthru
      _
    // Predicated region
    $region22: #{tpu_custom_call.1} parent=1 // pred_check
      _
    $region23: #{tpu_custom_call.1} parent=1 // pred_check_branch
      %42 = sbr.rel (0) target = $region25
    $region24: #{tpu_custom_call.1} parent=1 // pred_region
      _
    $region25: #{tpu_custom_call.1} parent=1 // pred_fallthru
      _
    // Predicated region
    $region26: #{tpu_custom_call.1} parent=1 // pred_check
      _
    $region27: #{tpu_custom_call.1} parent=1 // pred_check_branch
      %44 = sbr.rel (0) target = $region29
    $region28: #{tpu_custom_call.1} parent=1 // pred_region
      _
    $region29: #{tpu_custom_call.1} parent=1 // pred_fallthru
      _
    // Predicated region
    $region30: #{tpu_custom_call.1} parent=1 // pred_check
      _
    $region31: #{tpu_custom_call.1} parent=1 // pred_check_branch
      %46 = sbr.rel (0) target = $region33
    $region32: #{tpu_custom_call.1} parent=1 // pred_region
      %47 = dma.done [#allocation3], 16
    $region33: #{tpu_custom_call.1} parent=1 // pred_fallthru
      _
    // Predicated region
    $region34: #{tpu_custom_call.1} parent=1 // pred_check
      _
    $region35: #{tpu_custom_call.1} parent=1 // pred_check_branch
      %49 = sbr.rel (0) target = $region37
    $region36: #{tpu_custom_call.1} parent=1 // pred_region
      %50 = dma.done [#allocation6], 16
    $region37: #{tpu_custom_call.1} parent=1 // pred_fallthru
      _
    %v51 = vld [vmem:[%s0] sm:$0x3]
    %v52 = vld [vmem:[%s1] sm:$0xff]
    %v53 = vld [vmem:[%s1 + $0x8] sm:$0x3]
    %v54 = vld [vmem:[#allocation2] sm:$0x1]
    %v56 = vlaneseq
    %v57 = vshrl.u32 %v56, 7
    %v58 = vsub.s32 0, %v57
    %v59 = vrot.slane %v54, %v58
    %vm61 = vcmask 80896
    %v63 = vsel %vm61, %v51, 0
    %vm65 = vcmask 1041408
    %v67 = vsel %vm65, %v53, 0
    %69 = vmatprep.subr.mxu0 0.0
    %70 = vmatpush1.msra.mxu0 %v52
    %71 = vmatprep.subr.mxu0 0.0
    %72 = vmatpush1.msra.mxu0 %v67
    %73 = vmatprep.subr.mxu0 0.0
    %74 = vmatpush1.msra.mxu0 0.0
    %75 = vmatprep.subr.mxu0 0.0
    %76 = vmatpush1.msra.mxu0 0.0
    %77 = vmatprep.subr.mxu0 0.0
    %78 = vmatpush1.msra.mxu0 0.0
    %79 = vmatprep.subr.mxu0 0.0
    %80 = vmatpush1.msra.mxu0 0.0
    %81 = vmatprep.subr.mxu0 0.0
    %82 = vmatpush1.msra.mxu0 0.0
    %83 = vmatprep.subr.mxu0 0.0
    %84 = vmatpush1.msra.mxu0 0.0
    %85 = vmatprep.subr.mxu0 0.0
    %86 = vmatpush1.msra.mxu0 0.0
    %87 = vmatprep.subr.mxu0 0.0
    %88 = vmatpush1.msra.mxu0 0.0
    %89 = vmatprep.subr.mxu0 0.0
    %90 = vmatpush1.msra.mxu0 0.0
    %91 = vmatprep.subr.mxu0 0.0
    %92 = vmatpush1.msra.mxu0 0.0
    %93 = vmatprep.subr.mxu0 0.0
    %94 = vmatpush1.msra.mxu0 0.0
    %95 = vmatprep.subr.mxu0 0.0
    %96 = vmatpush1.msra.mxu0 0.0
    %97 = vmatprep.subr.mxu0 0.0
    %98 = vmatpush1.msra.mxu0 0.0
    %99 = vmatprep.subr.mxu0 0.0
    %100 = vmatpush1.msra.mxu0 0.0
    %101 = vmatprep.subr.mxu0 0.0
    %102 = vmatpush1.msra.mxu0 0.0
    %103 = vmatprep.subr.mxu0 0.0
    %104 = vmatpush1.msra.mxu0 0.0
    %105 = vmatprep.subr.mxu0 0.0
    %106 = vmatpush1.msra.mxu0 0.0
    %107 = vmatprep.subr.mxu0 0.0
    %108 = vmatpush1.msra.mxu0 0.0
    %109 = vmatprep.subr.mxu0 0.0
    %110 = vmatpush1.msra.mxu0 0.0
    %111 = vmatprep.subr.mxu0 0.0
    %112 = vmatpush1.msra.mxu0 0.0
    %113 = vmatprep.subr.mxu0 0.0
    %114 = vmatpush1.msra.mxu0 0.0
    %115 = vmatprep.subr.mxu0 0.0
    %116 = vmatpush1.msra.mxu0 0.0
    %117 = vmatprep.subr.mxu0 0.0
    %118 = vmatpush1.msra.mxu0 0.0
    %119 = vmatprep.subr.mxu0 0.0
    %120 = vmatpush1.msra.mxu0 0.0
    %121 = vmatprep.subr.mxu0 0.0
    %122 = vmatpush1.msra.mxu0 0.0
    %123 = vmatprep.subr.mxu0 0.0
    %124 = vmatpush1.msra.mxu0 0.0
    %125 = vmatprep.subr.mxu0 0.0
    %126 = vmatpush1.msra.mxu0 0.0
    %127 = vmatprep.subr.mxu0 0.0
    %128 = vmatpush1.msra.mxu0 0.0
    %129 = vmatprep.subr.mxu0 0.0
    %130 = vmatpush1.msra.mxu0 0.0
    %131 = vmatprep.subr.mxu0 0.0
    %132 = vmatpush1.msra.mxu0 0.0
    %133 = vmatprep.mubr.f32.mxu0 0.0
    %134 = vmatmul.mubr.f32.gmra.mrb[0].mxu0 %v63
    %v135 = vpop.f32.mrb[0].mxu0
    %v136 = vadd.f32 %v59, %v135
    %v137 = vpop.f32.mrb[0].mxu0
    %138 = vdwg.mxu0
    %v139 = vmax.f32 %v136, 0.0
    %v140 = vld [vmem:[%s3] sm:$0xff]
    %v141 = vld [vmem:[%s3 + $0x8] sm:$0xff]
    %v142 = vld [vmem:[%s3 + $0x10] sm:$0xff]
    %v143 = vld [vmem:[%s3 + $0x18] sm:$0xff]
    %v144 = vld [vmem:[#allocation5] sm:$0x1]
    %v146 = vlaneseq
    %v147 = vshrl.u32 %v146, 7
    %v148 = vsub.s32 0, %v147
    %v149 = vrot.slane %v144, %v148
    %vm151 = vcmask 261120
    %v153 = vsel %vm151, %v139, 0
    %155 = vmatprep.subr.mxu0 0.0
    %156 = vmatpush1.msra.mxu0 %v140
    %157 = vmatprep.subr.mxu0 0.0
    %158 = vmatpush1.msra.mxu0 %v141
    %159 = vmatprep.subr.mxu0 0.0
    %160 = vmatpush1.msra.mxu0 %v142
    %161 = vmatprep.subr.mxu0 0.0
    %162 = vmatpush1.msra.mxu0 %v143
    %163 = vmatprep.subr.mxu0 0.0
    %164 = vmatpush1.msra.mxu0 0.0
    %165 = vmatprep.subr.mxu0 0.0
    %166 = vmatpush1.msra.mxu0 0.0
    %167 = vmatprep.subr.mxu0 0.0
    %168 = vmatpush1.msra.mxu0 0.0
    %169 = vmatprep.subr.mxu0 0.0
    %170 = vmatpush1.msra.mxu0 0.0
    %171 = vmatprep.subr.mxu0 0.0
    %172 = vmatpush1.msra.mxu0 0.0
    %173 = vmatprep.subr.mxu0 0.0
    %174 = vmatpush1.msra.mxu0 0.0
    %175 = vmatprep.subr.mxu0 0.0
    %176 = vmatpush1.msra.mxu0 0.0
    %177 = vmatprep.subr.mxu0 0.0
    %178 = vmatpush1.msra.mxu0 0.0
    %179 = vmatprep.subr.mxu0 0.0
    %180 = vmatpush1.msra.mxu0 0.0
    %181 = vmatprep.subr.mxu0 0.0
    %182 = vmatpush1.msra.mxu0 0.0
    %183 = vmatprep.subr.mxu0 0.0
    %184 = vmatpush1.msra.mxu0 0.0
    %185 = vmatprep.subr.mxu0 0.0
    %186 = vmatpush1.msra.mxu0 0.0
    %187 = vmatprep.subr.mxu0 0.0
    %188 = vmatpush1.msra.mxu0 0.0
    %189 = vmatprep.subr.mxu0 0.0
    %190 = vmatpush1.msra.mxu0 0.0
    %191 = vmatprep.subr.mxu0 0.0
    %192 = vmatpush1.msra.mxu0 0.0
    %193 = vmatprep.subr.mxu0 0.0
    %194 = vmatpush1.msra.mxu0 0.0
    %195 = vmatprep.subr.mxu0 0.0
    %196 = vmatpush1.msra.mxu0 0.0
    %197 = vmatprep.subr.mxu0 0.0
    %198 = vmatpush1.msra.mxu0 0.0
    %199 = vmatprep.subr.mxu0 0.0
    %200 = vmatpush1.msra.mxu0 0.0
    %201 = vmatprep.subr.mxu0 0.0
    %202 = vmatpush1.msra.mxu0 0.0
    %203 = vmatprep.subr.mxu0 0.0
    %204 = vmatpush1.msra.mxu0 0.0
    %205 = vmatprep.subr.mxu0 0.0
    %206 = vmatpush1.msra.mxu0 0.0
    %207 = vmatprep.subr.mxu0 0.0
    %208 = vmatpush1.msra.mxu0 0.0
    %209 = vmatprep.subr.mxu0 0.0
    %210 = vmatpush1.msra.mxu0 0.0
    %211 = vmatprep.subr.mxu0 0.0
    %212 = vmatpush1.msra.mxu0 0.0
    %213 = vmatprep.subr.mxu0 0.0
    %214 = vmatpush1.msra.mxu0 0.0
    %215 = vmatprep.subr.mxu0 0.0
    %216 = vmatpush1.msra.mxu0 0.0
    %217 = vmatprep.subr.mxu0 0.0
    %218 = vmatpush1.msra.mxu0 0.0
    %219 = vmatprep.mubr.f32.mxu0 0.0
    %220 = vmatmul.mubr.f32.gmra.mrb[0].mxu0 %v153
    %v221 = vpop.f32.mrb[0].mxu0
    %v222 = vadd.f32 %v149, %v221
    %v223 = vpop.f32.mrb[0].mxu0
    %224 = vdwg.mxu0
    %v225 = vmax.f32 %v222, 0.0
    %v226 = vld [vmem:[%s5] sm:$0xff]
    %v227 = vld [vmem:[%s5 + $0x8] sm:$0xff]
    %v228 = vld [vmem:[%s5 + $0x10] sm:$0xff]
    %v229 = vld [vmem:[%s5 + $0x18] sm:$0xff]
    %v230 = vld [vmem:[%s6] sm:$0x1]
    %v232 = vlaneseq
    %v233 = vshrl.u32 %v232, 7
    %v234 = vsub.s32 0, %v233
    %v235 = vrot.slane %v230, %v234
    %v238 = vsel %vm151, %v225, 0
    %240 = vmatprep.subr.mxu0 0.0
    %241 = vmatpush1.msra.mxu0 %v226
    %242 = vmatprep.subr.mxu0 0.0
    %243 = vmatpush1.msra.mxu0 %v227
    %244 = vmatprep.subr.mxu0 0.0
    %245 = vmatpush1.msra.mxu0 %v228
    %246 = vmatprep.subr.mxu0 0.0
    %247 = vmatpush1.msra.mxu0 %v229
    %248 = vmatprep.subr.mxu0 0.0
    %249 = vmatpush1.msra.mxu0 0.0
    %250 = vmatprep.subr.mxu0 0.0
    %251 = vmatpush1.msra.mxu0 0.0
    %252 = vmatprep.subr.mxu0 0.0
    %253 = vmatpush1.msra.mxu0 0.0
    %254 = vmatprep.subr.mxu0 0.0
    %255 = vmatpush1.msra.mxu0 0.0
    %256 = vmatprep.subr.mxu0 0.0
    %257 = vmatpush1.msra.mxu0 0.0
    %258 = vmatprep.subr.mxu0 0.0
    %259 = vmatpush1.msra.mxu0 0.0
    %260 = vmatprep.subr.mxu0 0.0
    %261 = vmatpush1.msra.mxu0 0.0
    %262 = vmatprep.subr.mxu0 0.0
    %263 = vmatpush1.msra.mxu0 0.0
    %264 = vmatprep.subr.mxu0 0.0
    %265 = vmatpush1.msra.mxu0 0.0
    %266 = vmatprep.subr.mxu0 0.0
    %267 = vmatpush1.msra.mxu0 0.0
    %268 = vmatprep.subr.mxu0 0.0
    %269 = vmatpush1.msra.mxu0 0.0
    %270 = vmatprep.subr.mxu0 0.0
    %271 = vmatpush1.msra.mxu0 0.0
    %272 = vmatprep.subr.mxu0 0.0
    %273 = vmatpush1.msra.mxu0 0.0
    %274 = vmatprep.subr.mxu0 0.0
    %275 = vmatpush1.msra.mxu0 0.0
    %276 = vmatprep.subr.mxu0 0.0
    %277 = vmatpush1.msra.mxu0 0.0
    %278 = vmatprep.subr.mxu0 0.0
    %279 = vmatpush1.msra.mxu0 0.0
    %280 = vmatprep.subr.mxu0 0.0
    %281 = vmatpush1.msra.mxu0 0.0
    %282 = vmatprep.subr.mxu0 0.0
    %283 = vmatpush1.msra.mxu0 0.0
    %284 = vmatprep.subr.mxu0 0.0
    %285 = vmatpush1.msra.mxu0 0.0
    %286 = vmatprep.subr.mxu0 0.0
    %287 = vmatpush1.msra.mxu0 0.0
    %288 = vmatprep.subr.mxu0 0.0
    %289 = vmatpush1.msra.mxu0 0.0
    %290 = vmatprep.subr.mxu0 0.0
    %291 = vmatpush1.msra.mxu0 0.0
    %292 = vmatprep.subr.mxu0 0.0
    %293 = vmatpush1.msra.mxu0 0.0
    %294 = vmatprep.subr.mxu0 0.0
    %295 = vmatpush1.msra.mxu0 0.0
    %296 = vmatprep.subr.mxu0 0.0
    %297 = vmatpush1.msra.mxu0 0.0
    %298 = vmatprep.subr.mxu0 0.0
    %299 = vmatpush1.msra.mxu0 0.0
    %300 = vmatprep.subr.mxu0 0.0
    %301 = vmatpush1.msra.mxu0 0.0
    %302 = vmatprep.subr.mxu0 0.0
    %303 = vmatpush1.msra.mxu0 0.0
    %304 = vmatprep.mubr.f32.mxu0 0.0
    %305 = vmatmul.mubr.f32.gmra.mrb[0].mxu0 %v238
    %v306 = vpop.f32.mrb[0].mxu0
    %v307 = vadd.f32 %v235, %v306
    %v308 = vpop.f32.mrb[0].mxu0
    %309 = vdwg.mxu0
    %vm310 = vcmask 115712
    %311 = vst.msk [vmem:[#allocation7] sm:$0x3] %vm310, %v307
    // Predicated region
    $region38: #{tpu_custom_call.1} parent=1 // pred_check
      _
    $region39: #{tpu_custom_call.1} parent=1 // pred_check_branch
      %313 = sbr.rel (0) target = $region41
    $region40: #{tpu_custom_call.1} parent=1 // pred_region
      %s315 = ssub.s32 32, 32
      %316 = vsyncadd [#allocation4], %s315
      %s318 = sshll.u32 [#allocation7], 4
      %s319 = int_to_ptr.vmem [resolvable:$true] %s318
      %321 = dma.vmem_to_hbm [thread:$0]  %s319, 32, %s7, [#allocation4]
    $region41: #{tpu_custom_call.1} parent=1 // pred_fallthru
      _
    // Predicated region
    $region42: #{tpu_custom_call.1} parent=1 // pred_check
      _
    $region43: #{tpu_custom_call.1} parent=1 // pred_check_branch
      %323 = sbr.rel (0) target = $region45
    $region44: #{tpu_custom_call.1} parent=1 // pred_region
      %324 = dma.done [#allocation4], 32
    $region45: #{tpu_custom_call.1} parent=1 // pred_fallthru
      _
    %325 = vsyncpa [#allocation3], 1
    %326 = vsyncpa [#allocation6], 1
    %327 = vsyncpa [#allocation4], 1

</llo_original>
